<compile_context>
chip_gen: v5e
topology: v5e:2x2
jax: 0.10.0
libtpu: 0.0.40
codegen_flags: <defaults>
</compile_context>

<pallas_src>
import jax
import jax.numpy as jnp
from jax.experimental import pallas as pl
from jax.experimental.pallas import tpu as pltpu


def _stain_fusion_kernel(xh_ref, xi_ref, lnw_ref, lnb_ref, w_ref, b_ref, out_ref):
    """One (tb, tn, C) output tile.

    xh_ref  : (tn, C)        HES tokens (un-normalized)   -- tiled along n
    xi_ref  : (S-1, tb, C)   IHC tokens (un-normalized)   -- tiled along b
    lnw_ref : (1, C)         LayerNorm weight
    lnb_ref : (1, C)         LayerNorm bias
    w_ref   : (C, S-1)       Linear weight (transposed)
    b_ref   : (1, S-1)       Linear bias
    out_ref : (tb, tn, C)    (h + q @ v) / 2
    """
    lnw = lnw_ref[...].astype(jnp.float32)                    # (1, C)
    lnb = lnb_ref[...].astype(jnp.float32)                    # (1, C)

    # --- LayerNorm of the HES (cls-token) tile, eps = 1e-5 (torch default) ----
    xh = xh_ref[...].astype(jnp.float32)                      # (tn, C)
    mu = jnp.mean(xh, axis=-1, keepdims=True)
    ch = xh - mu
    var = jnp.mean(ch * ch, axis=-1, keepdims=True)
    h = (ch * jax.lax.rsqrt(var + 1e-5)) * lnw + lnb          # (tn, C)

    # --- q = Linear(drop(h)); dropout == identity (eval). Fold the /2 here. ---
    q_half = 0.5 * (
        jnp.dot(h, w_ref[...].astype(jnp.float32),
                preferred_element_type=jnp.float32)
        + b_ref[...].astype(jnp.float32)
    )                                                         # (tn, S-1)
    h_half = 0.5 * h                                          # (tn, C)

    # --- LayerNorm of the IHC tile ---------------------------------------------
    xi = xi_ref[...].astype(jnp.float32)                      # (S-1, tb, C)
    mu_i = jnp.mean(xi, axis=-1, keepdims=True)
    ci = xi - mu_i
    var_i = jnp.mean(ci * ci, axis=-1, keepdims=True)
    z = (ci * jax.lax.rsqrt(var_i + 1e-5)) * lnw + lnb        # (S-1, tb, C)

    # --- out[b, n, c] = h_half[n, c] + sum_k q_half[n, k] * z[k, b, c] ----------
    # S-1 is tiny (2 for 3 stains): initialize from the k=0 term + h (no zeros
    # init) and accumulate statically unrolled on the VPU.  For large S this
    # should become an MXU contraction instead.
    s_m1 = z.shape[0]
    q0 = q_half[:, 0:1]                                       # (tn, 1)
    acc = h_half[None, :, :] + q0[None, :, :] * z[0][:, None, :]
    for k in range(1, s_m1):
        qk = q_half[:, k:k + 1]                               # (tn, 1)
        acc = acc + qk[None, :, :] * z[k][:, None, :]         # (tb, tn, C)

    out_ref[...] = acc.astype(out_ref.dtype)


def _largest_tile(n, target):
    """Largest multiple of 8 that divides n and is <= target (or n itself)."""
    if n <= target:
        return n
    t = (target // 8) * 8
    while t >= 8:
        if n % t == 0:
            return t
        t -= 8
    return n


def _choose_tiles(n, c, elem_bytes):
    """Pick (tb, tn) so one output block stays ~<= 4 MiB: the double-buffered
    pair plus f32 accumulator temporaries and the tiny resident inputs then fit
    the 32 MiB scoped VMEM limit on all chips (v7x's 64 MiB physical included)."""
    max_block_bytes = 4 * 1024 * 1024
    max_plane = max(max_block_bytes // max(c * elem_bytes, 1), 64)   # tb * tn budget
    tn = _largest_tile(n, 128)                    # sublane axis of the output block
    tb = _largest_tile(n, max(8, max_plane // max(tn, 1)))
    return tb, tn


def stain_fusion(x_dict, stains, ln_w, ln_b, mlp_w_t, mlp_b):
    """Wrapper: splits stains into HES / IHC and invokes the tiled Pallas kernel."""
    S = len(stains)
    x_hes = x_dict[stains[0]]                                   # (N, C)
    x_ihc = jnp.stack([x_dict[s] for s in stains[1:]], axis=0)  # (S-1, N, C)
    N, C = x_hes.shape
    assert x_ihc.shape == (S - 1, N, C)

    elem_bytes = jnp.dtype(x_hes.dtype).itemsize
    tb, tn = _choose_tiles(N, C, elem_bytes)
    grid = (pl.cdiv(N, tb), pl.cdiv(N, tn))

    out = pl.pallas_call(
        _stain_fusion_kernel,
        out_shape=jax.ShapeDtypeStruct((N, N, C), x_hes.dtype),
        grid=grid,
        in_specs=[
            pl.BlockSpec((tn, C), lambda i, j: (j, 0)),            # HES tokens (by n)
            pl.BlockSpec((S - 1, tb, C), lambda i, j: (0, i, 0)),  # IHC tokens (by b)
            pl.BlockSpec((1, C), lambda i, j: (0, 0)),             # LN weight
            pl.BlockSpec((1, C), lambda i, j: (0, 0)),             # LN bias
            pl.BlockSpec((C, S - 1), lambda i, j: (0, 0)),         # Linear W^T
            pl.BlockSpec((1, S - 1), lambda i, j: (0, 0)),         # Linear bias
        ],
        out_specs=pl.BlockSpec((tb, tn, C), lambda i, j: (i, j, 0)),
        compiler_params=pltpu.CompilerParams(
            dimension_semantics=("parallel", "parallel"),
            vmem_limit_bytes=32 * 1024 * 1024,
        ),
    )(
        x_hes,
        x_ihc,
        ln_w.reshape(1, C),
        ln_b.reshape(1, C),
        mlp_w_t,
        mlp_b.reshape(1, S - 1),
    )

    # torch's .squeeze(dim=1) only acts when that dim has size 1 (i.e. N == 1).
    if N == 1:
        out = out[:, 0, :]
    return out


def _reference(x_all, ln_w, ln_b, mlp_w_t, mlp_b):
    """Pure-JAX reference mirroring the PyTorch forward (eval mode)."""
    mean = x_all.mean(-1, keepdims=True)
    var = ((x_all - mean) ** 2).mean(-1, keepdims=True)
    xn = (x_all - mean) / jnp.sqrt(var + 1e-5) * ln_w + ln_b
    h = xn[0]                                                # (N, C)
    q = h @ mlp_w_t + mlp_b                                  # (N, S-1)
    z = xn[1:]                                               # (S-1, N, C)
    qz = jnp.einsum("nk,kbc->bnc", q, z)                     # (N, N, C)
    return (h[None, :, :] + qz) / 2.0


if __name__ == "__main__":
    # Small, forward-implied shapes: S=3 stains, N=8 tokens per stain, mDim=32.
    stains = ("HES", "IHC_A", "IHC_B")
    S = len(stains)
    N, C = 8, 32

    key = jax.random.PRNGKey(0)
    k_x, k_lnw, k_lnb, k_w, k_b = jax.random.split(key, 5)

    x_dict = {}
    xk = jax.random.split(k_x, S)
    for i, s in enumerate(stains):
        x_dict[s] = jax.random.normal(xk[i], (N, C), jnp.float32)

    # Deterministic synthetic parameters (LayerNorm affine + Linear(mDim, S-1)).
    ln_w = 1.0 + 0.1 * jax.random.normal(k_lnw, (C,), jnp.float32)
    ln_b = 0.1 * jax.random.normal(k_lnb, (C,), jnp.float32)
    # torch stores Linear weight as (S-1, C); we pass its transpose (C, S-1).
    mlp_w_t = 0.1 * jax.random.normal(k_w, (C, S - 1), jnp.float32)
    mlp_b = 0.1 * jax.random.normal(k_b, (S - 1,), jnp.float32)

    out = stain_fusion(x_dict, stains, ln_w, ln_b, mlp_w_t, mlp_b)
    out = jax.block_until_ready(out)

    x_all = jnp.stack([x_dict[s] for s in stains], axis=0)
    ref = _reference(x_all, ln_w, ln_b, mlp_w_t, mlp_b)

    assert out.shape == (N, N, C), out.shape
    assert jnp.allclose(out, ref, atol=1e-4, rtol=1e-4), (
        float(jnp.max(jnp.abs(out - ref)))
    )
    print("KERNEL_OK")
</pallas_src>

<mosaic_0001>
module attributes {stable_mosaic.version = 11 : i64} {
  func.func @_stain_fusion_kernel(%arg0: i32, %arg1: i32, %arg2: memref<8x32xf32, #tpu.memory_space<vmem>>, %arg3: memref<2x8x32xf32, #tpu.memory_space<vmem>>, %arg4: memref<1x32xf32, #tpu.memory_space<vmem>>, %arg5: memref<1x32xf32, #tpu.memory_space<vmem>>, %arg6: memref<32x2xf32, #tpu.memory_space<vmem>>, %arg7: memref<1x2xf32, #tpu.memory_space<vmem>>, %arg8: memref<8x8x32xf32, #tpu.memory_space<vmem>>) attributes {dimension_semantics = [#tpu.dimension_semantics<parallel>, #tpu.dimension_semantics<parallel>], iteration_bounds = array<i64: 1, 1>, scalar_prefetch = 0 : i64, scratch_operands = 0 : i64, tpu.core_type = #tpu.core_type<tc>, window_params = [{transform_indices = @transform_0, window_bounds = array<i64: 8, 32>}, {transform_indices = @transform_1, window_bounds = array<i64: 2, 8, 32>}, {pipeline_mode = #tpu.pipeline_mode<synchronous>, transform_indices = @transform_2, window_bounds = array<i64: 1, 32>}, {pipeline_mode = #tpu.pipeline_mode<synchronous>, transform_indices = @transform_3, window_bounds = array<i64: 1, 32>}, {pipeline_mode = #tpu.pipeline_mode<synchronous>, transform_indices = @transform_4, window_bounds = array<i64: 32, 2>}, {pipeline_mode = #tpu.pipeline_mode<synchronous>, transform_indices = @transform_5, window_bounds = array<i64: 1, 2>}, {transform_indices = @transform_6, window_bounds = array<i64: 8, 8, 32>}]} {
    %c0 = arith.constant 0 : index
    %c0_0 = arith.constant 0 : index
    %0 = vector.load %arg4[%c0, %c0_0] : memref<1x32xf32, #tpu.memory_space<vmem>>, vector<1x32xf32>
    %c0_1 = arith.constant 0 : index
    %c0_2 = arith.constant 0 : index
    %1 = vector.load %arg5[%c0_1, %c0_2] : memref<1x32xf32, #tpu.memory_space<vmem>>, vector<1x32xf32>
    %c0_3 = arith.constant 0 : index
    %c0_4 = arith.constant 0 : index
    %2 = vector.load %arg2[%c0_3, %c0_4] : memref<8x32xf32, #tpu.memory_space<vmem>>, vector<8x32xf32>
    %cst = arith.constant dense<0.000000e+00> : vector<8xf32>
    %3 = vector.multi_reduction <add>, %2, %cst [1] : vector<8x32xf32> to vector<8xf32>
    %4 = vector.shape_cast %3 : vector<8xf32> to vector<8x1xf32>
    %cst_5 = arith.constant 3.200000e+01 : f32
    %5 = vector.broadcast %cst_5 : f32 to vector<8x1xf32>
    %6 = arith.divf %4, %5 : vector<8x1xf32>
    %7 = vector.broadcast %6 : vector<8x1xf32> to vector<8x32xf32>
    %8 = arith.subf %2, %7 : vector<8x32xf32>
    %9 = arith.mulf %8, %8 : vector<8x32xf32>
    %cst_6 = arith.constant dense<0.000000e+00> : vector<8xf32>
    %10 = vector.multi_reduction <add>, %9, %cst_6 [1] : vector<8x32xf32> to vector<8xf32>
    %11 = vector.shape_cast %10 : vector<8xf32> to vector<8x1xf32>
    %cst_7 = arith.constant 3.200000e+01 : f32
    %12 = vector.broadcast %cst_7 : f32 to vector<8x1xf32>
    %13 = arith.divf %11, %12 : vector<8x1xf32>
    %cst_8 = arith.constant 9.99999974E-6 : f32
    %14 = vector.broadcast %cst_8 : f32 to vector<8x1xf32>
    %15 = arith.addf %13, %14 : vector<8x1xf32>
    %16 = math.rsqrt %15 : vector<8x1xf32>
    %17 = vector.broadcast %16 : vector<8x1xf32> to vector<8x32xf32>
    %18 = arith.mulf %8, %17 : vector<8x32xf32>
    %19 = vector.broadcast %0 : vector<1x32xf32> to vector<8x32xf32>
    %20 = arith.mulf %18, %19 : vector<8x32xf32>
    %21 = vector.broadcast %1 : vector<1x32xf32> to vector<8x32xf32>
    %22 = arith.addf %20, %21 : vector<8x32xf32>
    %c0_9 = arith.constant 0 : index
    %c0_10 = arith.constant 0 : index
    %23 = vector.load %arg6[%c0_9, %c0_10] : memref<32x2xf32, #tpu.memory_space<vmem>>, vector<32x2xf32>
    %cst_11 = arith.constant dense<0.000000e+00> : vector<8x2xf32>
    %24 = tpu.matmul %22, %23, %cst_11 {dimension_numbers = #tpu.dot_dimension_numbers<[1], [0], [0], [1], [0, 0, 1, 1], [], []>} : vector<8x32xf32>, vector<32x2xf32>, vector<8x2xf32> -> vector<8x2xf32>
    %c0_12 = arith.constant 0 : index
    %c0_13 = arith.constant 0 : index
    %25 = vector.load %arg7[%c0_12, %c0_13] : memref<1x2xf32, #tpu.memory_space<vmem>>, vector<1x2xf32>
    %26 = vector.broadcast %25 : vector<1x2xf32> to vector<8x2xf32>
    %27 = arith.addf %24, %26 : vector<8x2xf32>
    %cst_14 = arith.constant 5.000000e-01 : f32
    %28 = vector.broadcast %cst_14 : f32 to vector<8x2xf32>
    %29 = arith.mulf %28, %27 : vector<8x2xf32>
    %cst_15 = arith.constant 5.000000e-01 : f32
    %30 = vector.broadcast %cst_15 : f32 to vector<8x32xf32>
    %31 = arith.mulf %30, %22 : vector<8x32xf32>
    %c0_16 = arith.constant 0 : index
    %c0_17 = arith.constant 0 : index
    %c0_18 = arith.constant 0 : index
    %32 = vector.load %arg3[%c0_16, %c0_17, %c0_18] : memref<2x8x32xf32, #tpu.memory_space<vmem>>, vector<2x8x32xf32>
    %cst_19 = arith.constant dense<0.000000e+00> : vector<2x8xf32>
    %33 = vector.multi_reduction <add>, %32, %cst_19 [2] : vector<2x8x32xf32> to vector<2x8xf32>
    %34 = vector.shape_cast %33 : vector<2x8xf32> to vector<2x8x1xf32>
    %cst_20 = arith.constant 3.200000e+01 : f32
    %35 = vector.broadcast %cst_20 : f32 to vector<2x8x1xf32>
    %36 = arith.divf %34, %35 : vector<2x8x1xf32>
    %37 = vector.broadcast %36 : vector<2x8x1xf32> to vector<2x8x32xf32>
    %38 = arith.subf %32, %37 : vector<2x8x32xf32>
    %39 = arith.mulf %38, %38 : vector<2x8x32xf32>
    %cst_21 = arith.constant dense<0.000000e+00> : vector<2x8xf32>
    %40 = vector.multi_reduction <add>, %39, %cst_21 [2] : vector<2x8x32xf32> to vector<2x8xf32>
    %41 = vector.shape_cast %40 : vector<2x8xf32> to vector<2x8x1xf32>
    %cst_22 = arith.constant 3.200000e+01 : f32
    %42 = vector.broadcast %cst_22 : f32 to vector<2x8x1xf32>
    %43 = arith.divf %41, %42 : vector<2x8x1xf32>
    %cst_23 = arith.constant 9.99999974E-6 : f32
    %44 = vector.broadcast %cst_23 : f32 to vector<2x8x1xf32>
    %45 = arith.addf %43, %44 : vector<2x8x1xf32>
    %46 = math.rsqrt %45 : vector<2x8x1xf32>
    %47 = vector.broadcast %46 : vector<2x8x1xf32> to vector<2x8x32xf32>
    %48 = arith.mulf %38, %47 : vector<2x8x32xf32>
    %49 = vector.shape_cast %0 : vector<1x32xf32> to vector<1x1x32xf32>
    %50 = vector.broadcast %49 : vector<1x1x32xf32> to vector<2x8x32xf32>
    %51 = arith.mulf %48, %50 : vector<2x8x32xf32>
    %52 = vector.shape_cast %1 : vector<1x32xf32> to vector<1x1x32xf32>
    %53 = vector.broadcast %52 : vector<1x1x32xf32> to vector<2x8x32xf32>
    %54 = arith.addf %51, %53 : vector<2x8x32xf32>
    %55 = vector.extract_strided_slice %29 {offsets = [0, 0], sizes = [8, 1], strides = [1, 1]} : vector<8x2xf32> to vector<8x1xf32>
    %56 = vector.shape_cast %31 : vector<8x32xf32> to vector<1x8x32xf32>
    %57 = vector.shape_cast %55 : vector<8x1xf32> to vector<1x8x1xf32>
    %58 = vector.extract_strided_slice %54 {offsets = [0, 0, 0], sizes = [1, 8, 32], strides = [1, 1, 1]} : vector<2x8x32xf32> to vector<1x8x32xf32>
    %59 = vector.shape_cast %58 : vector<1x8x32xf32> to vector<8x32xf32>
    %60 = vector.shape_cast %59 : vector<8x32xf32> to vector<8x1x32xf32>
    %61 = vector.broadcast %57 : vector<1x8x1xf32> to vector<8x8x32xf32>
    %62 = vector.broadcast %60 : vector<8x1x32xf32> to vector<8x8x32xf32>
    %63 = arith.mulf %61, %62 : vector<8x8x32xf32>
    %64 = vector.broadcast %56 : vector<1x8x32xf32> to vector<8x8x32xf32>
    %65 = arith.addf %64, %63 : vector<8x8x32xf32>
    %66 = vector.extract_strided_slice %29 {offsets = [0, 1], sizes = [8, 1], strides = [1, 1]} : vector<8x2xf32> to vector<8x1xf32>
    %67 = vector.shape_cast %66 : vector<8x1xf32> to vector<1x8x1xf32>
    %68 = vector.extract_strided_slice %54 {offsets = [1, 0, 0], sizes = [1, 8, 32], strides = [1, 1, 1]} : vector<2x8x32xf32> to vector<1x8x32xf32>
    %69 = vector.shape_cast %68 : vector<1x8x32xf32> to vector<8x32xf32>
    %70 = vector.shape_cast %69 : vector<8x32xf32> to vector<8x1x32xf32>
    %71 = vector.broadcast %67 : vector<1x8x1xf32> to vector<8x8x32xf32>
    %72 = vector.broadcast %70 : vector<8x1x32xf32> to vector<8x8x32xf32>
    %73 = arith.mulf %71, %72 : vector<8x8x32xf32>
    %74 = arith.addf %65, %73 : vector<8x8x32xf32>
    %c0_24 = arith.constant 0 : index
    %c0_25 = arith.constant 0 : index
    %c0_26 = arith.constant 0 : index
    %75 = vector.load %arg8[%c0_24, %c0_25, %c0_26] : memref<8x8x32xf32, #tpu.memory_space<vmem>>, vector<8x8x32xf32>
    tpu.vector_store %arg8[%c0_24, %c0_25, %c0_26], %74 {strides = array<i32>} : memref<8x8x32xf32, #tpu.memory_space<vmem>>, vector<8x8x32xf32>,
    return
  }
  func.func @transform_0(%arg0: i32, %arg1: i32) -> (i32, i32) {
    %c0_i32 = arith.constant 0 : i32
    %c0_i32_0 = arith.constant 0 : i32
    return %arg1, %c0_i32 : i32, i32
  }
  func.func @transform_1(%arg0: i32, %arg1: i32) -> (i32, i32, i32) {
    %c0_i32 = arith.constant 0 : i32
    %c0_i32_0 = arith.constant 0 : i32
    %c0_i32_1 = arith.constant 0 : i32
    return %c0_i32, %arg0, %c0_i32_0 : i32, i32, i32
  }
  func.func @transform_2(%arg0: i32, %arg1: i32) -> (i32, i32) {
    %c0_i32 = arith.constant 0 : i32
    %c0_i32_0 = arith.constant 0 : i32
    %c0_i32_1 = arith.constant 0 : i32
    return %c0_i32, %c0_i32_0 : i32, i32
  }
  func.func @transform_3(%arg0: i32, %arg1: i32) -> (i32, i32) {
    %c0_i32 = arith.constant 0 : i32
    %c0_i32_0 = arith.constant 0 : i32
    %c0_i32_1 = arith.constant 0 : i32
    return %c0_i32, %c0_i32_0 : i32, i32
  }
  func.func @transform_4(%arg0: i32, %arg1: i32) -> (i32, i32) {
    %c0_i32 = arith.constant 0 : i32
    %c0_i32_0 = arith.constant 0 : i32
    %c0_i32_1 = arith.constant 0 : i32
    return %c0_i32, %c0_i32_0 : i32, i32
  }
  func.func @transform_5(%arg0: i32, %arg1: i32) -> (i32, i32) {
    %c0_i32 = arith.constant 0 : i32
    %c0_i32_0 = arith.constant 0 : i32
    %c0_i32_1 = arith.constant 0 : i32
    return %c0_i32, %c0_i32_0 : i32, i32
  }
  func.func @transform_6(%arg0: i32, %arg1: i32) -> (i32, i32, i32) {
    %c0_i32 = arith.constant 0 : i32
    %c0_i32_0 = arith.constant 0 : i32
    return %arg0, %arg1, %c0_i32 : i32, i32, i32
  }
}

</mosaic_0001>

<llo_original>
// kernel: tpu_custom_call.1
$region0: #{tpu_custom_call.1}
  #allocation0 [shape = 'u32[]', space=smem, size = 0x4, offset = 0x4, fixed_abs, tag = 'smem constant byte address 0x4 - core index']
  #allocation1 [shape = 'u32[72,128]{1,0:T(1,128)}', space=vmem, size = 0x9000, scoped, tag = 'internal scratch']
  %s0 = inlined_call_operand.vmem [shape: f32[8,32], index: 0, kind: input, shape index: {}]
  %s1 = inlined_call_operand.vmem [shape: f32[2,8,32], index: 1, kind: input, shape index: {}]
  %s2 = inlined_call_operand.vmem [shape: f32[1,32], index: 2, kind: input, shape index: {}]
  %s3 = inlined_call_operand.vmem [shape: f32[1,32], index: 3, kind: input, shape index: {}]
  %s4 = inlined_call_operand.vmem [shape: f32[32,2], index: 4, kind: input, shape index: {}]
  %s5 = inlined_call_operand.vmem [shape: f32[1,2], index: 5, kind: input, shape index: {}]
  %s6 = inlined_call_operand.hbm [shape: f32[8,8,32], index: 6, kind: output, shape index: {}]
  %s7 = sld [smem:[#allocation0]]
  $region34: #{tpu_custom_call.1} parent=0
    _
  %s9 = ssub.s32 1, %s7
  %s10 = scalar_select 0, %s9, %s7
  $region1: #{tpu_custom_call.1} parent=0
    #allocation2 [shape = 'u8[32768]{0}', space=vmem, size = 0x8000, scoped, tag = 'output window, operand 0, single buffered']
    #allocation3 [shape = 's32[1]{0}', space=sflag, size = 0x4, scoped, tag = 'scoped memory for tpu_custom_call.1']
    %11 = vsyncpa [#allocation3], 0
    // Predicated region
    $region2: #{tpu_custom_call.1} parent=1 // pred_check
      _
    $region3: #{tpu_custom_call.1} parent=1 // pred_check_branch
      %13 = sbr.rel (0) target = $region5
    $region4: #{tpu_custom_call.1} parent=1 // pred_region
      _
    $region5: #{tpu_custom_call.1} parent=1 // pred_fallthru
      _
    // Predicated region
    $region6: #{tpu_custom_call.1} parent=1 // pred_check
      _
    $region7: #{tpu_custom_call.1} parent=1 // pred_check_branch
      %15 = sbr.rel (0) target = $region9
    $region8: #{tpu_custom_call.1} parent=1 // pred_region
      _
    $region9: #{tpu_custom_call.1} parent=1 // pred_fallthru
      _
    // Predicated region
    $region10: #{tpu_custom_call.1} parent=1 // pred_check
      _
    $region11: #{tpu_custom_call.1} parent=1 // pred_check_branch
      %17 = sbr.rel (0) target = $region13
    $region12: #{tpu_custom_call.1} parent=1 // pred_region
      _
    $region13: #{tpu_custom_call.1} parent=1 // pred_fallthru
      _
    // Predicated region
    $region14: #{tpu_custom_call.1} parent=1 // pred_check
      _
    $region15: #{tpu_custom_call.1} parent=1 // pred_check_branch
      %19 = sbr.rel (0) target = $region17
    $region16: #{tpu_custom_call.1} parent=1 // pred_region
      _
    $region17: #{tpu_custom_call.1} parent=1 // pred_fallthru
      _
    // Predicated region
    $region18: #{tpu_custom_call.1} parent=1 // pred_check
      _
    $region19: #{tpu_custom_call.1} parent=1 // pred_check_branch
      %21 = sbr.rel (0) target = $region21
    $region20: #{tpu_custom_call.1} parent=1 // pred_region
      _
    $region21: #{tpu_custom_call.1} parent=1 // pred_fallthru
      _
    // Predicated region
    $region22: #{tpu_custom_call.1} parent=1 // pred_check
      _
    $region23: #{tpu_custom_call.1} parent=1 // pred_check_branch
      %23 = sbr.rel (0) target = $region25
    $region24: #{tpu_custom_call.1} parent=1 // pred_region
      _
    $region25: #{tpu_custom_call.1} parent=1 // pred_fallthru
      _
    %v24 = vld [vmem:[%s2] sm:$0x1]
    %v25 = vld [vmem:[%s3] sm:$0x1]
    %v26 = vld [vmem:[%s0] sm:$0xff]
    %vm27 = vcmask 261120
    %v28 = vsel %vm27, %v26, 0.0
    %29 = vadd.xlane.f32.xlu0 %v28
    %v30 = vpop.xlane.xlu0 %29
    %v31 = vrcp.pop 32.0
    %v32 = vmul.f32 32.0, %v31
    %v33 = vsub.f32 1.0, %v32
    %v34 = vmul.f32 %v31, %v33
    %v35 = vadd.f32 %v31, %v34
    %vm36 = vweird.f32 %v31
    %v37 = vsel %vm36, %v31, %v35
    %v38 = vmul.f32 %v30, %v37
    %v39 = vsub.f32 %v26, %v38
    %v40 = vmul.f32 %v39, %v39
    %v41 = vsel %vm27, %v40, 0.0
    %42 = vadd.xlane.f32.xlu0 %v41
    %v43 = vpop.xlane.xlu0 %42
    %v44 = vmul.f32 %v43, %v37
    %v45 = vadd.f32 %v44, 1e-05
    %v46 = vrsqrt.pop %v45
    %v47 = vmul.f32 %v46, %v45
    %v48 = vmul.f32 %v47, %v46
    %v49 = vmul.f32 0.5, %v48
    %v50 = vsub.f32 1.5, %v49
    %v51 = vmul.f32 %v46, %v50
    %vm52 = vweird.f32 %v45
    %vm53 = vweird.f32 %v46
    %vm54 = vmor %vm52, %vm53
    %v55 = vsel %vm54, %v46, %v51
    %v56 = vmul.f32 %v39, %v55
    %v58 = vperm.slane %v24, 0
    %v60 = vmul.f32 %v56, %v58
    %v62 = vperm.slane %v25, 0
    %v64 = vadd.f32 %v60, %v62
    %v65 = vld [vmem:[%s4] sm:$0xff]
    %v66 = vld [vmem:[%s4 + $0x8] sm:$0xff]
    %v67 = vld [vmem:[%s4 + $0x10] sm:$0xff]
    %v68 = vld [vmem:[%s4 + $0x18] sm:$0xff]
    %v69 = vld [vmem:[%s5] sm:$0x1]
    %v71 = vperm.slane %v69, 0
    %v74 = vsel %vm27, %v64, 0
    %76 = vmatpush.msra.mxu0 0.0
    %77 = vmatpush.msra.mxu0 0.0
    %78 = vmatpush.msra.mxu0 0.0
    %79 = vmatpush.msra.mxu0 0.0
    %80 = vmatpush.msra.mxu0 0.0
    %81 = vmatpush.msra.mxu0 0.0
    %82 = vmatpush.msra.mxu0 0.0
    %83 = vmatpush.msra.mxu0 0.0
    %84 = vmatpush.msra.mxu0 0.0
    %85 = vmatpush.msra.mxu0 0.0
    %86 = vmatpush.msra.mxu0 0.0
    %87 = vmatpush.msra.mxu0 0.0
    %88 = vmatpush.msra.mxu0 %v68
    %89 = vmatpush.msra.mxu0 %v67
    %90 = vmatpush.msra.mxu0 %v66
    %91 = vmatpush.msra.mxu0 %v65
    %92 = vmatmul.f32.gmra.mxu0 %v74
    %v93 = vpop.f32.mrf.mxu0
    %v94 = vadd.f32 %v71, %v93
    %95 = vdwg.mxu0
    %v96 = vmul.f32 %v94, 0.5
    %v97 = vmul.f32 %v64, 0.5
    %v98 = vld [vmem:[%s1] sm:$0xff]
    %v99 = vld [vmem:[%s1 + $0x8] sm:$0xff]
    %v100 = vsel %vm27, %v98, 0.0
    %101 = vadd.xlane.f32.xlu0 %v100
    %v102 = vpop.xlane.xlu0 %101
    %v103 = vsel %vm27, %v99, 0.0
    %104 = vadd.xlane.f32.xlu0 %v103
    %v105 = vpop.xlane.xlu0 %104
    %v106 = vmul.f32 %v102, %v37
    %v107 = vmul.f32 %v105, %v37
    %v108 = vsub.f32 %v98, %v106
    %v109 = vsub.f32 %v99, %v107
    %v110 = vmul.f32 %v108, %v108
    %v111 = vmul.f32 %v109, %v109
    %v112 = vsel %vm27, %v110, 0.0
    %113 = vadd.xlane.f32.xlu0 %v112
    %v114 = vpop.xlane.xlu0 %113
    %v115 = vsel %vm27, %v111, 0.0
    %116 = vadd.xlane.f32.xlu0 %v115
    %v117 = vpop.xlane.xlu0 %116
    %v118 = vmul.f32 %v114, %v37
    %v119 = vmul.f32 %v117, %v37
    %v120 = vadd.f32 %v118, 1e-05
    %v121 = vadd.f32 %v119, 1e-05
    %v122 = vrsqrt.pop %v120
    %v123 = vmul.f32 %v122, %v120
    %v124 = vmul.f32 %v123, %v122
    %v125 = vmul.f32 0.5, %v124
    %v126 = vsub.f32 1.5, %v125
    %v127 = vmul.f32 %v122, %v126
    %vm128 = vweird.f32 %v120
    %vm129 = vweird.f32 %v122
    %vm130 = vmor %vm128, %vm129
    %v131 = vsel %vm130, %v122, %v127
    %v132 = vrsqrt.pop %v121
    %v133 = vmul.f32 %v132, %v121
    %v134 = vmul.f32 %v133, %v132
    %v135 = vmul.f32 0.5, %v134
    %v136 = vsub.f32 1.5, %v135
    %v137 = vmul.f32 %v132, %v136
    %vm138 = vweird.f32 %v121
    %vm139 = vweird.f32 %v132
    %vm140 = vmor %vm138, %vm139
    %v141 = vsel %vm140, %v132, %v137
    %v142 = vmul.f32 %v108, %v131
    %v143 = vmul.f32 %v109, %v141
    %v144 = vmul.f32 %v142, %v58
    %v145 = vmul.f32 %v143, %v58
    %v146 = vadd.f32 %v144, %v62
    %v147 = vadd.f32 %v145, %v62
    %v149 = vrot.slane %v146, 1
    %v150 = vrot.slane %v146, 2
    %v151 = vrot.slane %v146, 3
    %v152 = vrot.slane %v146, 4
    %v153 = vrot.slane %v146, 5
    %v154 = vrot.slane %v146, 6
    %v155 = vrot.slane %v146, 7
    %157 = vset.pattern.permute.xlu0 0
    %158 = vperm.xlu0 %157, %v96
    %v159 = vpop.permute.xlu0 %158
    %v161 = vperm.slane %v146, 0
    %v162 = vperm.slane %v149, 0
    %v163 = vperm.slane %v150, 0
    %v164 = vperm.slane %v151, 0
    %v165 = vperm.slane %v152, 0
    %v166 = vperm.slane %v153, 0
    %v167 = vperm.slane %v154, 0
    %v168 = vperm.slane %v155, 0
    %v177 = vmul.f32 %v159, %v161
    %v178 = vmul.f32 %v159, %v162
    %v179 = vmul.f32 %v159, %v163
    %v180 = vmul.f32 %v159, %v164
    %v181 = vmul.f32 %v159, %v165
    %v182 = vmul.f32 %v159, %v166
    %v183 = vmul.f32 %v159, %v167
    %v184 = vmul.f32 %v159, %v168
    %v185 = vadd.f32 %v97, %v177
    %v186 = vadd.f32 %v97, %v178
    %v187 = vadd.f32 %v97, %v179
    %v188 = vadd.f32 %v97, %v180
    %v189 = vadd.f32 %v97, %v181
    %v190 = vadd.f32 %v97, %v182
    %v191 = vadd.f32 %v97, %v183
    %v192 = vadd.f32 %v97, %v184
    %v194 = vrot.slane %v147, 1
    %v195 = vrot.slane %v147, 2
    %v196 = vrot.slane %v147, 3
    %v197 = vrot.slane %v147, 4
    %v198 = vrot.slane %v147, 5
    %v199 = vrot.slane %v147, 6
    %v200 = vrot.slane %v147, 7
    %201 = vset.pattern.permute.xlu0 1
    %202 = vperm.xlu0 %201, %v96
    %v203 = vpop.permute.xlu0 %202
    %v205 = vperm.slane %v147, 0
    %v206 = vperm.slane %v194, 0
    %v207 = vperm.slane %v195, 0
    %v208 = vperm.slane %v196, 0
    %v209 = vperm.slane %v197, 0
    %v210 = vperm.slane %v198, 0
    %v211 = vperm.slane %v199, 0
    %v212 = vperm.slane %v200, 0
    %v221 = vmul.f32 %v203, %v205
    %v222 = vmul.f32 %v203, %v206
    %v223 = vmul.f32 %v203, %v207
    %v224 = vmul.f32 %v203, %v208
    %v225 = vmul.f32 %v203, %v209
    %v226 = vmul.f32 %v203, %v210
    %v227 = vmul.f32 %v203, %v211
    %v228 = vmul.f32 %v203, %v212
    %v229 = vadd.f32 %v185, %v221
    %v230 = vadd.f32 %v186, %v222
    %v231 = vadd.f32 %v187, %v223
    %v232 = vadd.f32 %v188, %v224
    %v233 = vadd.f32 %v189, %v225
    %v234 = vadd.f32 %v190, %v226
    %v235 = vadd.f32 %v191, %v227
    %v236 = vadd.f32 %v192, %v228
    %237 = vst.msk [vmem:[#allocation2] sm:$0xff] %vm27, %v229
    %238 = vst.msk [vmem:[#allocation2 + $0x8] sm:$0xff] %vm27, %v230
    %239 = vst.msk [vmem:[#allocation2 + $0x10] sm:$0xff] %vm27, %v231
    %240 = vst.msk [vmem:[#allocation2 + $0x18] sm:$0xff] %vm27, %v232
    %241 = vst.msk [vmem:[#allocation2 + $0x20] sm:$0xff] %vm27, %v233
    %242 = vst.msk [vmem:[#allocation2 + $0x28] sm:$0xff] %vm27, %v234
    %243 = vst.msk [vmem:[#allocation2 + $0x30] sm:$0xff] %vm27, %v235
    %244 = vst.msk [vmem:[#allocation2 + $0x38] sm:$0xff] %vm27, %v236
    // Predicated region
    $region26: #{tpu_custom_call.1} parent=1 // pred_check
      _
    $region27: #{tpu_custom_call.1} parent=1 // pred_check_branch
      %246 = sbr.rel (0) target = $region29
    $region28: #{tpu_custom_call.1} parent=1 // pred_region
      %248 = vsyncadd [#allocation3], 0
      %s249 = sshll.u32 [#allocation2], 4
      %s250 = int_to_ptr.vmem [resolvable:$true] %s249
      %s251 = sshll.u32 %s6, 4
      %s252 = int_to_ptr.hbm [resolvable:$true] %s251
      %257 = dma.vmem_to_hbm [thread:$0]  %s250, 1024, %s252, [#allocation3], 128, 128, 8
    $region29: #{tpu_custom_call.1} parent=1 // pred_fallthru
      _
    // Predicated region
    $region30: #{tpu_custom_call.1} parent=1 // pred_check
      _
    $region31: #{tpu_custom_call.1} parent=1 // pred_check_branch
      %259 = sbr.rel (0) target = $region33
    $region32: #{tpu_custom_call.1} parent=1 // pred_region
      %261 = dma.done [#allocation3], 1024
    $region33: #{tpu_custom_call.1} parent=1 // pred_fallthru
      _
    %262 = vsyncpa [#allocation3], 1

</llo_original>
